<compile_context>
chip_gen: v6e
topology: v6e:2x2x1
jax: 0.10.0
libtpu: 0.0.40
codegen_flags: <defaults>
</compile_context>

<pallas_src>
import functools

import jax
import jax.numpy as jnp
from jax import lax
from jax.experimental import pallas as pl
from jax.experimental.pallas import tpu as pltpu


def _round_up(x, m):
    return ((x + m - 1) // m) * m


# ---------------------------------------------------------------------------
# Pallas kernel
# ---------------------------------------------------------------------------
def _make_char_cnn_kernel(tbw, Tp, Vp, max_ks, Np):
    M = tbw * Tp

    def kernel(char_ref, wf_ref, bias_ref, out_ref):
        # ---- one-hot of the char indices (the embedding gather itself rides
        # the MXU against the table-folded conv weight; no (M, E) tensor).
        char = char_ref[...]                                          # (tbw, Tp) i32
        iota = lax.broadcasted_iota(jnp.int32, (tbw, Tp, Vp), 2)
        onehot = (iota == char[:, :, None]).astype(jnp.bfloat16)      # (tbw, Tp, Vp)
        onehot = onehot.reshape(M, Vp)                                # free leading merge

        # ---- im2col on the one-hot: tap k is a pure sublane roll; rows that
        # spill past the current word / tile only feed time positions the
        # bias-mask drives to zero.  Each piece is a full 128-lane group, so
        # the axis-1 concat is a block concatenation (no cross-lane repack).
        pieces = [onehot] + [jnp.roll(onehot, -k, axis=0) for k in range(1, max_ks)]
        oh = jnp.concatenate(pieces, axis=1)                          # (M, max_ks*Vp)

        # ---- gather + every conv (all kernel sizes / taps / channels) in one
        # deep-K MXU matmul with f32 accumulation.
        conv = jnp.dot(oh, wf_ref[...], preferred_element_type=jnp.float32)  # (M, Np)
        conv = conv.reshape(tbw, Tp, Np)                              # free leading split

        # ---- fused epilogue: bias (-FLT_MAX at invalid time/lane positions)
        # + ReLU + max-pool over time -> single dense (tbw, Np) store.
        out_ref[...] = jnp.max(
            jnp.maximum(conv + bias_ref[...][None, :, :], 0.0), axis=1)

    return kernel


# ---------------------------------------------------------------------------
# Wrapper
# ---------------------------------------------------------------------------
@functools.partial(jax.jit, static_argnames=("kernel_sizes", "tbw"))
def char_cnn_embedding(char, embed_table, conv_ws, conv_bs, *, kernel_sizes, tbw=512):
    """char: (B, W, T) int; returns (B, W, C*len(kernel_sizes)) float32."""
    batch, max_word_len, T = char.shape
    V, E = embed_table.shape
    C = conv_ws[0].shape[0]
    out_dim = C * len(kernel_sizes)
    max_ks = max(kernel_sizes)
    assert max_ks <= T, "kernel size exceeds max_char_len"

    Vp = _round_up(V, 128)                  # MXU contraction dim (one-hot width)
    Np = _round_up(out_dim, 128)            # lane-dense output width
    Tp = _round_up(T, 8)                    # sublane-aligned time axis

    # --- fold embedding table into per-tap conv weights ---------------------
    table = jnp.zeros((Vp, E), jnp.float32).at[:V, :].set(embed_table.astype(jnp.float32))
    table = table.at[0, :].set(0.0)         # enforce padding_idx=0 semantics

    neg = jnp.finfo(jnp.float32).min        # "masked" bias value (ReLU -> 0)
    wf = jnp.zeros((max_ks * Vp, Np), jnp.float32)
    bias_full = jnp.full((Tp, Np), neg, jnp.float32)
    for i, (ks, w, b) in enumerate(zip(kernel_sizes, conv_ws, conv_bs)):
        for k in range(ks):                 # tap k of kernel-size ks
            # Wk[v, c] = sum_e table[v, e] * w[c, k, e]   (f32, then bf16 once)
            wk = table @ w[:, k, :].astype(jnp.float32).T          # (Vp, C)
            wf = wf.at[k * Vp:(k + 1) * Vp, i * C:(i + 1) * C].set(wk)
        # valid output times for this kernel size: t in [0, T-ks]
        bias_full = bias_full.at[:T - ks + 1, i * C:(i + 1) * C].set(
            b.astype(jnp.float32)[None, :])
    wf = wf.astype(jnp.bfloat16)

    # --- flatten words, adaptive row tile, pad rows & time axis -------------
    bw = batch * max_word_len
    tbw = min(tbw, _round_up(bw, 8))        # don't pad tiny inputs up to 512 rows
    bw_pad = _round_up(bw, tbw)
    char_flat = char.reshape(bw, T).astype(jnp.int32)
    char_flat = jnp.pad(char_flat, ((0, bw_pad - bw), (0, Tp - T)))

    # --- explicit VMEM budget (flat-sum estimate + margin, < v7x 64 MiB) ----
    M = tbw * Tp
    est = (M * Vp * 6                        # i32 iota + bf16 base one-hot
           + M * max_ks * Vp * 4             # rolled taps + lane-concat copy (bf16)
           + M * Np * 8                      # f32 conv + f32 activation
           + 4 * tbw * Np * 4                # double-buffered output tile
           + 4 * tbw * Tp * 4                # double-buffered char tile
           + 2 * (max_ks * Vp * Np * 2 + Tp * Np * 4))   # fused weight / bias buffers
    vmem_limit = min(max(int(est * 1.25) + (4 << 20), 32 * 1024 * 1024),
                     56 * 1024 * 1024)

    kernel = _make_char_cnn_kernel(tbw, Tp, Vp, max_ks, Np)

    out = pl.pallas_call(
        kernel,
        out_shape=jax.ShapeDtypeStruct((bw_pad, Np), jnp.float32),
        grid_spec=pltpu.PrefetchScalarGridSpec(
            num_scalar_prefetch=0,
            grid=(bw_pad // tbw,),
            in_specs=[
                pl.BlockSpec((tbw, Tp), lambda i: (i, 0)),            # char indices
                pl.BlockSpec((max_ks * Vp, Np), lambda i: (0, 0)),    # fused (table@conv) weights
                pl.BlockSpec((Tp, Np), lambda i: (0, 0)),             # bias + time/lane mask
            ],
            out_specs=pl.BlockSpec((tbw, Np), lambda i: (i, 0)),
        ),
        # "parallel" lets the single BW grid axis shard across both TensorCores
        # on v7x; neutral on v5e/v6e (1 TC).
        compiler_params=pltpu.CompilerParams(
            dimension_semantics=("parallel",),
            vmem_limit_bytes=vmem_limit),
    )(char_flat, wf, bias_full)

    return out[:bw, :out_dim].reshape(batch, max_word_len, out_dim)


# ---------------------------------------------------------------------------
# Pure-JAX reference (mirrors the PyTorch forward) for a correctness check.
# ---------------------------------------------------------------------------
def ref_forward(char, embed_table, conv_ws, conv_bs, kernel_sizes):
    emb = embed_table.astype(jnp.float32)[char]               # (B, W, T, E)
    T = emb.shape[2]
    outs = []
    for w, b, ks in zip(conv_ws, conv_bs, kernel_sizes):
        w = w.astype(jnp.float32)
        t_out = T - ks + 1
        acc = jnp.zeros(emb.shape[:2] + (t_out, w.shape[0]), jnp.float32)
        for k in range(ks):
            acc = acc + jnp.einsum("bwte,ce->bwtc",
                                   emb[:, :, k:k + t_out, :], w[:, k, :],
                                   precision=lax.Precision.HIGHEST)
        conv = jax.nn.relu(acc + b.astype(jnp.float32)[None, None, None, :])
        outs.append(jnp.max(conv, axis=2))
    return jnp.concatenate(outs, axis=-1)


# ---------------------------------------------------------------------------
if __name__ == "__main__":
    # Small, module-consistent shapes.
    batch = 2
    max_word_len = 8
    max_char_len = 16
    char_vocab_size = 20
    embed_size = 32
    channel_out = 8                 # channel_in = 1 is implied by unsqueeze(1)
    kernel_sizes = (2, 3, 4)

    key = jax.random.PRNGKey(0)
    k_emb, k_char, *k_w = jax.random.split(key, 2 + 2 * len(kernel_sizes))

    # Deterministic parameter init; store params in bf16 (kernel matmul dtype)
    # so the f32 reference uses the identical (bf16-rounded) values.
    embed_table = 0.1 * jax.random.normal(k_emb, (char_vocab_size, embed_size), jnp.float32)
    embed_table = embed_table.at[0].set(0.0)          # padding_idx=0
    embed_table = embed_table.astype(jnp.bfloat16)

    conv_ws, conv_bs = [], []
    for i, ks in enumerate(kernel_sizes):
        # PyTorch Conv2d weight (C_out, 1, ks, E) stored as (C_out, ks, E) since C_in=1.
        conv_ws.append((0.1 * jax.random.normal(
            k_w[2 * i], (channel_out, ks, embed_size), jnp.float32)).astype(jnp.bfloat16))
        conv_bs.append(0.1 * jax.random.normal(k_w[2 * i + 1], (channel_out,), jnp.float32))

    char = jax.random.randint(k_char, (batch, max_word_len, max_char_len),
                              0, char_vocab_size, dtype=jnp.int32)

    out = char_cnn_embedding(char, embed_table, tuple(conv_ws), tuple(conv_bs),
                             kernel_sizes=kernel_sizes)
    out = jax.block_until_ready(out)

    expected = ref_forward(char, embed_table, conv_ws, conv_bs, kernel_sizes)
    assert out.shape == (batch, max_word_len, channel_out * len(kernel_sizes))
    assert jnp.allclose(out, expected, atol=1e-2, rtol=1e-2), "mismatch vs reference"

    # TODO(synk): nn.Dropout from __init__ is never applied in forward (and
    # config.dropout is undefined in the spec), so it is intentionally omitted.
    print("KERNEL_OK")
</pallas_src>

<mosaic_0001>
module attributes {stable_mosaic.version = 11 : i64} {
  func.func @kernel(%arg0: i32, %arg1: memref<16x16xi32, #tpu.memory_space<vmem>>, %arg2: memref<512x128xbf16, #tpu.memory_space<vmem>>, %arg3: memref<16x128xf32, #tpu.memory_space<vmem>>, %arg4: memref<16x128xf32, #tpu.memory_space<vmem>>) attributes {dimension_semantics = [#tpu.dimension_semantics<parallel>], iteration_bounds = array<i64: 1>, scalar_prefetch = 0 : i64, scratch_operands = 0 : i64, tpu.core_type = #tpu.core_type<tc>, window_params = [{transform_indices = @transform_0, window_bounds = array<i64: 16, 16>}, {pipeline_mode = #tpu.pipeline_mode<synchronous>, transform_indices = @transform_1, window_bounds = array<i64: 512, 128>}, {pipeline_mode = #tpu.pipeline_mode<synchronous>, transform_indices = @transform_2, window_bounds = array<i64: 16, 128>}, {transform_indices = @transform_3, window_bounds = array<i64: 16, 128>}]} {
    %c0 = arith.constant 0 : index
    %c0_0 = arith.constant 0 : index
    %0 = vector.load %arg1[%c0, %c0_0] : memref<16x16xi32, #tpu.memory_space<vmem>>, vector<16x16xi32>
    %1 = tpu.iota {dimensions = array<i32: 2>} : vector<16x16x128xi32>
    %2 = vector.shape_cast %0 : vector<16x16xi32> to vector<16x16x1xi32>
    %3 = vector.broadcast %2 : vector<16x16x1xi32> to vector<16x16x128xi32>
    %4 = arith.cmpi eq, %1, %3 : vector<16x16x128xi32>
    %5 = arith.extui %4 : vector<16x16x128xi1> to vector<16x16x128xi32>
    %6 = arith.sitofp %5 : vector<16x16x128xi32> to vector<16x16x128xf32>
    %7 = arith.truncf %6 : vector<16x16x128xf32> to vector<16x16x128xbf16>
    %8 = vector.shape_cast %7 : vector<16x16x128xbf16> to vector<256x128xbf16>
    %9 = vector.extract_strided_slice %8 {offsets = [1, 0], sizes = [255, 128], strides = [1, 1]} : vector<256x128xbf16> to vector<255x128xbf16>
    %10 = vector.extract_strided_slice %8 {offsets = [0, 0], sizes = [1, 128], strides = [1, 1]} : vector<256x128xbf16> to vector<1x128xbf16>
    %11 = tpu.concatenate %9, %10 in 0 : vector<255x128xbf16>, vector<1x128xbf16> -> vector<256x128xbf16>
    %12 = vector.extract_strided_slice %8 {offsets = [2, 0], sizes = [254, 128], strides = [1, 1]} : vector<256x128xbf16> to vector<254x128xbf16>
    %13 = vector.extract_strided_slice %8 {offsets = [0, 0], sizes = [2, 128], strides = [1, 1]} : vector<256x128xbf16> to vector<2x128xbf16>
    %14 = tpu.concatenate %12, %13 in 0 : vector<254x128xbf16>, vector<2x128xbf16> -> vector<256x128xbf16>
    %15 = vector.extract_strided_slice %8 {offsets = [3, 0], sizes = [253, 128], strides = [1, 1]} : vector<256x128xbf16> to vector<253x128xbf16>
    %16 = vector.extract_strided_slice %8 {offsets = [0, 0], sizes = [3, 128], strides = [1, 1]} : vector<256x128xbf16> to vector<3x128xbf16>
    %17 = tpu.concatenate %15, %16 in 0 : vector<253x128xbf16>, vector<3x128xbf16> -> vector<256x128xbf16>
    %18 = tpu.concatenate %8, %11, %14, %17 in 1 : vector<256x128xbf16>, vector<256x128xbf16>, vector<256x128xbf16>, vector<256x128xbf16> -> vector<256x512xbf16>
    %c0_1 = arith.constant 0 : index
    %c0_2 = arith.constant 0 : index
    %19 = vector.load %arg2[%c0_1, %c0_2] : memref<512x128xbf16, #tpu.memory_space<vmem>>, vector<512x128xbf16>
    %cst = arith.constant dense<0.000000e+00> : vector<256x128xf32>
    %20 = tpu.matmul %18, %19, %cst {dimension_numbers = #tpu.dot_dimension_numbers<[1], [0], [0], [1], [0, 0, 1, 1], [], []>} : vector<256x512xbf16>, vector<512x128xbf16>, vector<256x128xf32> -> vector<256x128xf32>
    %21 = vector.shape_cast %20 : vector<256x128xf32> to vector<16x16x128xf32>
    %c0_3 = arith.constant 0 : index
    %c0_4 = arith.constant 0 : index
    %22 = vector.load %arg3[%c0_3, %c0_4] : memref<16x128xf32, #tpu.memory_space<vmem>>, vector<16x128xf32>
    %23 = vector.shape_cast %22 : vector<16x128xf32> to vector<1x16x128xf32>
    %24 = vector.broadcast %23 : vector<1x16x128xf32> to vector<16x16x128xf32>
    %25 = arith.addf %21, %24 : vector<16x16x128xf32>
    %cst_5 = arith.constant 0.000000e+00 : f32
    %26 = vector.broadcast %cst_5 : f32 to vector<16x16x128xf32>
    %27 = arith.maximumf %25, %26 : vector<16x16x128xf32>
    %cst_6 = arith.constant dense<0xFF800000> : vector<16x128xf32>
    %28 = vector.multi_reduction <maximumf>, %27, %cst_6 [1] : vector<16x16x128xf32> to vector<16x128xf32>
    %c0_7 = arith.constant 0 : index
    %c0_8 = arith.constant 0 : index
    %29 = vector.load %arg4[%c0_7, %c0_8] : memref<16x128xf32, #tpu.memory_space<vmem>>, vector<16x128xf32>
    tpu.vector_store %arg4[%c0_7, %c0_8], %28 {strides = array<i32>} : memref<16x128xf32, #tpu.memory_space<vmem>>, vector<16x128xf32>,
    return
  }
  func.func @transform_0(%arg0: i32) -> (i32, i32) {
    %c0_i32 = arith.constant 0 : i32
    %c0_i32_0 = arith.constant 0 : i32
    return %arg0, %c0_i32 : i32, i32
  }
  func.func @transform_1(%arg0: i32) -> (i32, i32) {
    %c0_i32 = arith.constant 0 : i32
    %c0_i32_0 = arith.constant 0 : i32
    %c0_i32_1 = arith.constant 0 : i32
    return %c0_i32, %c0_i32_0 : i32, i32
  }
  func.func @transform_2(%arg0: i32) -> (i32, i32) {
    %c0_i32 = arith.constant 0 : i32
    %c0_i32_0 = arith.constant 0 : i32
    %c0_i32_1 = arith.constant 0 : i32
    return %c0_i32, %c0_i32_0 : i32, i32
  }
  func.func @transform_3(%arg0: i32) -> (i32, i32) {
    %c0_i32 = arith.constant 0 : i32
    %c0_i32_0 = arith.constant 0 : i32
    return %arg0, %c0_i32 : i32, i32
  }
}

</mosaic_0001>

<llo_original>
// kernel: char_cnn_embedding.1
$region0: #{char_cnn_embedding.1}
  #allocation0 [shape = 'u32[]', space=smem, size = 0x4, offset = 0x4, fixed_abs, tag = 'smem constant byte address 0x4 - core index']
  #allocation1 [shape = 'u32[144,128]{1,0:T(1,128)}', space=vmem, size = 0x12000, scoped, tag = 'internal scratch']
  %s0 = inlined_call_operand.vmem [shape: s32[16,16], index: 0, kind: input, shape index: {}]
  %s1 = inlined_call_operand.vmem [shape: bf16[512,128], index: 1, kind: input, shape index: {}]
  %s2 = inlined_call_operand.vmem [shape: f32[16,128], index: 2, kind: input, shape index: {}]
  %s3 = inlined_call_operand.vmem [shape: f32[16,128], index: 3, kind: output, shape index: {}]
  %s4 = sld [smem:[#allocation0]]
  $region22: #{char_cnn_embedding.1} parent=0
    _
  %s6 = ssub.s32 1, %s4
  %s7 = scalar_select 0, %s6, %s4
  // Predicated region
  $region2: #{char_cnn_embedding.1} parent=0 // pred_check
    _
  $region3: #{char_cnn_embedding.1} parent=0 // pred_check_branch
    %9 = sbr.rel (0) target = $region5
  $region4: #{char_cnn_embedding.1} parent=0 // pred_region
    _
  $region5: #{char_cnn_embedding.1} parent=0 // pred_fallthru
    _
  // Predicated region
  $region6: #{char_cnn_embedding.1} parent=0 // pred_check
    _
  $region7: #{char_cnn_embedding.1} parent=0 // pred_check_branch
    %11 = sbr.rel (0) target = $region9
  $region8: #{char_cnn_embedding.1} parent=0 // pred_region
    _
  $region9: #{char_cnn_embedding.1} parent=0 // pred_fallthru
    _
  // Predicated region
  $region10: #{char_cnn_embedding.1} parent=0 // pred_check
    _
  $region11: #{char_cnn_embedding.1} parent=0 // pred_check_branch
    %13 = sbr.rel (0) target = $region13
  $region12: #{char_cnn_embedding.1} parent=0 // pred_region
    _
  $region13: #{char_cnn_embedding.1} parent=0 // pred_fallthru
    _
  %v15 = vld [vmem:[%s0] sm:$0xff]
  %v16 = vld [vmem:[%s0 + $0x8] sm:$0xff]
  %v17 = vlaneseq
  %v18 = vand.u32 %v17, 127
  %v19 = vlaneseq
  %v20 = vshrl.u32 %v19, 7
  %v21 = vsub.s32 0, %v20
  %v22 = vrot.slane %v15, %v21
  %24 = vbcast.lane.b32.xlu0 %v22, 256
  %v25 = vpop.permute.xlu0 %24
  %s27 = sor.u32 256, 8
  %28 = vbcast.lane.b32.xlu0 %v22, %s27
  %v29 = vpop.permute.xlu0 %28
  %v30 = vlaneseq
  %v31 = vshrl.u32 %v30, 7
  %v32 = vsub.s32 1, %v31
  %v33 = vrot.slane %v15, %v32
  %35 = vbcast.lane.b32.xlu0 %v33, 256
  %v36 = vpop.permute.xlu0 %35
  %s38 = sor.u32 256, 8
  %39 = vbcast.lane.b32.xlu0 %v33, %s38
  %v40 = vpop.permute.xlu0 %39
  %v41 = vlaneseq
  %v42 = vshrl.u32 %v41, 7
  %v43 = vsub.s32 2, %v42
  %v44 = vrot.slane %v15, %v43
  %46 = vbcast.lane.b32.xlu0 %v44, 256
  %v47 = vpop.permute.xlu0 %46
  %s49 = sor.u32 256, 8
  %50 = vbcast.lane.b32.xlu0 %v44, %s49
  %v51 = vpop.permute.xlu0 %50
  %v52 = vlaneseq
  %v53 = vshrl.u32 %v52, 7
  %v54 = vsub.s32 3, %v53
  %v55 = vrot.slane %v15, %v54
  %57 = vbcast.lane.b32.xlu0 %v55, 256
  %v58 = vpop.permute.xlu0 %57
  %s60 = sor.u32 256, 8
  %61 = vbcast.lane.b32.xlu0 %v55, %s60
  %v62 = vpop.permute.xlu0 %61
  %v63 = vlaneseq
  %v64 = vshrl.u32 %v63, 7
  %v65 = vsub.s32 4, %v64
  %v66 = vrot.slane %v15, %v65
  %68 = vbcast.lane.b32.xlu0 %v66, 256
  %v69 = vpop.permute.xlu0 %68
  %s71 = sor.u32 256, 8
  %72 = vbcast.lane.b32.xlu0 %v66, %s71
  %v73 = vpop.permute.xlu0 %72
  %v74 = vlaneseq
  %v75 = vshrl.u32 %v74, 7
  %v76 = vsub.s32 5, %v75
  %v77 = vrot.slane %v15, %v76
  %79 = vbcast.lane.b32.xlu0 %v77, 256
  %v80 = vpop.permute.xlu0 %79
  %s82 = sor.u32 256, 8
  %83 = vbcast.lane.b32.xlu0 %v77, %s82
  %v84 = vpop.permute.xlu0 %83
  %v85 = vlaneseq
  %v86 = vshrl.u32 %v85, 7
  %v87 = vsub.s32 6, %v86
  %v88 = vrot.slane %v15, %v87
  %90 = vbcast.lane.b32.xlu0 %v88, 256
  %v91 = vpop.permute.xlu0 %90
  %s93 = sor.u32 256, 8
  %94 = vbcast.lane.b32.xlu0 %v88, %s93
  %v95 = vpop.permute.xlu0 %94
  %v96 = vlaneseq
  %v97 = vshrl.u32 %v96, 7
  %v98 = vsub.s32 7, %v97
  %v99 = vrot.slane %v15, %v98
  %101 = vbcast.lane.b32.xlu0 %v99, 256
  %v102 = vpop.permute.xlu0 %101
  %s104 = sor.u32 256, 8
  %105 = vbcast.lane.b32.xlu0 %v99, %s104
  %v106 = vpop.permute.xlu0 %105
  %v107 = vlaneseq
  %v108 = vshrl.u32 %v107, 7
  %v109 = vsub.s32 0, %v108
  %v110 = vrot.slane %v16, %v109
  %112 = vbcast.lane.b32.xlu0 %v110, 256
  %v113 = vpop.permute.xlu0 %112
  %s115 = sor.u32 256, 8
  %116 = vbcast.lane.b32.xlu0 %v110, %s115
  %v117 = vpop.permute.xlu0 %116
  %v118 = vlaneseq
  %v119 = vshrl.u32 %v118, 7
  %v120 = vsub.s32 1, %v119
  %v121 = vrot.slane %v16, %v120
  %123 = vbcast.lane.b32.xlu0 %v121, 256
  %v124 = vpop.permute.xlu0 %123
  %s126 = sor.u32 256, 8
  %127 = vbcast.lane.b32.xlu0 %v121, %s126
  %v128 = vpop.permute.xlu0 %127
  %v129 = vlaneseq
  %v130 = vshrl.u32 %v129, 7
  %v131 = vsub.s32 2, %v130
  %v132 = vrot.slane %v16, %v131
  %134 = vbcast.lane.b32.xlu0 %v132, 256
  %v135 = vpop.permute.xlu0 %134
  %s137 = sor.u32 256, 8
  %138 = vbcast.lane.b32.xlu0 %v132, %s137
  %v139 = vpop.permute.xlu0 %138
  %v140 = vlaneseq
  %v141 = vshrl.u32 %v140, 7
  %v142 = vsub.s32 3, %v141
  %v143 = vrot.slane %v16, %v142
  %145 = vbcast.lane.b32.xlu0 %v143, 256
  %v146 = vpop.permute.xlu0 %145
  %s148 = sor.u32 256, 8
  %149 = vbcast.lane.b32.xlu0 %v143, %s148
  %v150 = vpop.permute.xlu0 %149
  %v151 = vlaneseq
  %v152 = vshrl.u32 %v151, 7
  %v153 = vsub.s32 4, %v152
  %v154 = vrot.slane %v16, %v153
  %156 = vbcast.lane.b32.xlu0 %v154, 256
  %v157 = vpop.permute.xlu0 %156
  %s159 = sor.u32 256, 8
  %160 = vbcast.lane.b32.xlu0 %v154, %s159
  %v161 = vpop.permute.xlu0 %160
  %v162 = vlaneseq
  %v163 = vshrl.u32 %v162, 7
  %v164 = vsub.s32 5, %v163
  %v165 = vrot.slane %v16, %v164
  %167 = vbcast.lane.b32.xlu0 %v165, 256
  %v168 = vpop.permute.xlu0 %167
  %s170 = sor.u32 256, 8
  %171 = vbcast.lane.b32.xlu0 %v165, %s170
  %v172 = vpop.permute.xlu0 %171
  %v173 = vlaneseq
  %v174 = vshrl.u32 %v173, 7
  %v175 = vsub.s32 6, %v174
  %v176 = vrot.slane %v16, %v175
  %178 = vbcast.lane.b32.xlu0 %v176, 256
  %v179 = vpop.permute.xlu0 %178
  %s181 = sor.u32 256, 8
  %182 = vbcast.lane.b32.xlu0 %v176, %s181
  %v183 = vpop.permute.xlu0 %182
  %v184 = vlaneseq
  %v185 = vshrl.u32 %v184, 7
  %v186 = vsub.s32 7, %v185
  %v187 = vrot.slane %v16, %v186
  %189 = vbcast.lane.b32.xlu0 %v187, 256
  %v190 = vpop.permute.xlu0 %189
  %s192 = sor.u32 256, 8
  %193 = vbcast.lane.b32.xlu0 %v187, %s192
  %v194 = vpop.permute.xlu0 %193
  %vm195 = vcmp.eq.s32.totalorder %v18, %v25
  %vm196 = vcmp.eq.s32.totalorder %v18, %v29
  %vm197 = vcmp.eq.s32.totalorder %v18, %v36
  %vm198 = vcmp.eq.s32.totalorder %v18, %v40
  %vm199 = vcmp.eq.s32.totalorder %v18, %v47
  %vm200 = vcmp.eq.s32.totalorder %v18, %v51
  %vm201 = vcmp.eq.s32.totalorder %v18, %v58
  %vm202 = vcmp.eq.s32.totalorder %v18, %v62
  %vm203 = vcmp.eq.s32.totalorder %v18, %v69
  %vm204 = vcmp.eq.s32.totalorder %v18, %v73
  %vm205 = vcmp.eq.s32.totalorder %v18, %v80
  %vm206 = vcmp.eq.s32.totalorder %v18, %v84
  %vm207 = vcmp.eq.s32.totalorder %v18, %v91
  %vm208 = vcmp.eq.s32.totalorder %v18, %v95
  %vm209 = vcmp.eq.s32.totalorder %v18, %v102
  %vm210 = vcmp.eq.s32.totalorder %v18, %v106
  %vm211 = vcmp.eq.s32.totalorder %v18, %v113
  %vm212 = vcmp.eq.s32.totalorder %v18, %v117
  %vm213 = vcmp.eq.s32.totalorder %v18, %v124
  %vm214 = vcmp.eq.s32.totalorder %v18, %v128
  %vm215 = vcmp.eq.s32.totalorder %v18, %v135
  %vm216 = vcmp.eq.s32.totalorder %v18, %v139
  %vm217 = vcmp.eq.s32.totalorder %v18, %v146
  %vm218 = vcmp.eq.s32.totalorder %v18, %v150
  %vm219 = vcmp.eq.s32.totalorder %v18, %v157
  %vm220 = vcmp.eq.s32.totalorder %v18, %v161
  %vm221 = vcmp.eq.s32.totalorder %v18, %v168
  %vm222 = vcmp.eq.s32.totalorder %v18, %v172
  %vm223 = vcmp.eq.s32.totalorder %v18, %v179
  %vm224 = vcmp.eq.s32.totalorder %v18, %v183
  %vm225 = vcmp.eq.s32.totalorder %v18, %v190
  %vm226 = vcmp.eq.s32.totalorder %v18, %v194
  %v227 = vsel %vm195, 1, 0
  %v228 = vsel %vm196, 1, 0
  %v229 = vsel %vm197, 1, 0
  %v230 = vsel %vm198, 1, 0
  %v231 = vsel %vm199, 1, 0
  %v232 = vsel %vm200, 1, 0
  %v233 = vsel %vm201, 1, 0
  %v234 = vsel %vm202, 1, 0
  %v235 = vsel %vm203, 1, 0
  %v236 = vsel %vm204, 1, 0
  %v237 = vsel %vm205, 1, 0
  %v238 = vsel %vm206, 1, 0
  %v239 = vsel %vm207, 1, 0
  %v240 = vsel %vm208, 1, 0
  %v241 = vsel %vm209, 1, 0
  %v242 = vsel %vm210, 1, 0
  %v243 = vsel %vm211, 1, 0
  %v244 = vsel %vm212, 1, 0
  %v245 = vsel %vm213, 1, 0
  %v246 = vsel %vm214, 1, 0
  %v247 = vsel %vm215, 1, 0
  %v248 = vsel %vm216, 1, 0
  %v249 = vsel %vm217, 1, 0
  %v250 = vsel %vm218, 1, 0
  %v251 = vsel %vm219, 1, 0
  %v252 = vsel %vm220, 1, 0
  %v253 = vsel %vm221, 1, 0
  %v254 = vsel %vm222, 1, 0
  %v255 = vsel %vm223, 1, 0
  %v256 = vsel %vm224, 1, 0
  %v257 = vsel %vm225, 1, 0
  %v258 = vsel %vm226, 1, 0
  %v259 = vcvt.s32.f32 %v227
  %v260 = vcvt.s32.f32 %v228
  %v261 = vcvt.s32.f32 %v229
  %v262 = vcvt.s32.f32 %v230
  %v263 = vcvt.s32.f32 %v231
  %v264 = vcvt.s32.f32 %v232
  %v265 = vcvt.s32.f32 %v233
  %v266 = vcvt.s32.f32 %v234
  %v267 = vcvt.s32.f32 %v235
  %v268 = vcvt.s32.f32 %v236
  %v269 = vcvt.s32.f32 %v237
  %v270 = vcvt.s32.f32 %v238
  %v271 = vcvt.s32.f32 %v239
  %v272 = vcvt.s32.f32 %v240
  %v273 = vcvt.s32.f32 %v241
  %v274 = vcvt.s32.f32 %v242
  %v275 = vcvt.s32.f32 %v243
  %v276 = vcvt.s32.f32 %v244
  %v277 = vcvt.s32.f32 %v245
  %v278 = vcvt.s32.f32 %v246
  %v279 = vcvt.s32.f32 %v247
  %v280 = vcvt.s32.f32 %v248
  %v281 = vcvt.s32.f32 %v249
  %v282 = vcvt.s32.f32 %v250
  %v283 = vcvt.s32.f32 %v251
  %v284 = vcvt.s32.f32 %v252
  %v285 = vcvt.s32.f32 %v253
  %v286 = vcvt.s32.f32 %v254
  %v287 = vcvt.s32.f32 %v255
  %v288 = vcvt.s32.f32 %v256
  %v289 = vcvt.s32.f32 %v257
  %v290 = vcvt.s32.f32 %v258
  %v291 = vpack.c.bf16 %v260, %v259
  %v292 = vpack.c.bf16 %v262, %v261
  %v293 = vpack.c.bf16 %v264, %v263
  %v294 = vpack.c.bf16 %v266, %v265
  %v295 = vpack.c.bf16 %v268, %v267
  %v296 = vpack.c.bf16 %v270, %v269
  %v297 = vpack.c.bf16 %v272, %v271
  %v298 = vpack.c.bf16 %v274, %v273
  %v299 = vpack.c.bf16 %v276, %v275
  %v300 = vpack.c.bf16 %v278, %v277
  %v301 = vpack.c.bf16 %v280, %v279
  %v302 = vpack.c.bf16 %v282, %v281
  %v303 = vpack.c.bf16 %v284, %v283
  %v304 = vpack.c.bf16 %v286, %v285
  %v305 = vpack.c.bf16 %v288, %v287
  %v306 = vpack.c.bf16 %v290, %v289
  %vm307 = vsmask.f32 7424
  %v309 = vshrl.u32 %v291, 16
  %v311 = vshll.u32 %v291, 16
  %v313 = vrot.slane %v311, 1
  %v314 = vor.u32 %v309, %v313
  %v316 = vshll.u32 %v292, 16
  %v318 = vrot.slane %v316, 1
  %v319 = vsel %vm307, %v314, %v318
  %v320 = vshrl.u32 %v292, 16
  %v322 = vor.u32 %v320, %v318
  %v324 = vshll.u32 %v293, 16
  %v326 = vrot.slane %v324, 1
  %v327 = vsel %vm307, %v322, %v326
  %v328 = vshrl.u32 %v293, 16
  %v330 = vor.u32 %v328, %v326
  %v332 = vshll.u32 %v294, 16
  %v334 = vrot.slane %v332, 1
  %v335 = vsel %vm307, %v330, %v334
  %v336 = vshrl.u32 %v294, 16
  %v338 = vor.u32 %v336, %v334
  %v340 = vshll.u32 %v295, 16
  %v342 = vrot.slane %v340, 1
  %v343 = vsel %vm307, %v338, %v342
  %v344 = vshrl.u32 %v295, 16
  %v346 = vor.u32 %v344, %v342
  %v348 = vshll.u32 %v296, 16
  %v350 = vrot.slane %v348, 1
  %v351 = vsel %vm307, %v346, %v350
  %v352 = vshrl.u32 %v296, 16
  %v354 = vor.u32 %v352, %v350
  %v356 = vshll.u32 %v297, 16
  %v358 = vrot.slane %v356, 1
  %v359 = vsel %vm307, %v354, %v358
  %v360 = vshrl.u32 %v297, 16
  %v362 = vor.u32 %v360, %v358
  %v364 = vshll.u32 %v298, 16
  %v366 = vrot.slane %v364, 1
  %v367 = vsel %vm307, %v362, %v366
  %v368 = vshrl.u32 %v298, 16
  %v370 = vor.u32 %v368, %v366
  %v372 = vshll.u32 %v299, 16
  %v374 = vrot.slane %v372, 1
  %v375 = vsel %vm307, %v370, %v374
  %v376 = vshrl.u32 %v299, 16
  %v378 = vor.u32 %v376, %v374
  %v380 = vshll.u32 %v300, 16
  %v382 = vrot.slane %v380, 1
  %v383 = vsel %vm307, %v378, %v382
  %v384 = vshrl.u32 %v300, 16
  %v386 = vor.u32 %v384, %v382
  %v388 = vshll.u32 %v301, 16
  %v390 = vrot.slane %v388, 1
  %v391 = vsel %vm307, %v386, %v390
  %v392 = vshrl.u32 %v301, 16
  %v394 = vor.u32 %v392, %v390
  %v396 = vshll.u32 %v302, 16
  %v398 = vrot.slane %v396, 1
  %v399 = vsel %vm307, %v394, %v398
  %v400 = vshrl.u32 %v302, 16
  %v402 = vor.u32 %v400, %v398
  %v404 = vshll.u32 %v303, 16
  %v406 = vrot.slane %v404, 1
  %v407 = vsel %vm307, %v402, %v406
  %v408 = vshrl.u32 %v303, 16
  %v410 = vor.u32 %v408, %v406
  %v412 = vshll.u32 %v304, 16
  %v414 = vrot.slane %v412, 1
  %v415 = vsel %vm307, %v410, %v414
  %v416 = vshrl.u32 %v304, 16
  %v418 = vor.u32 %v416, %v414
  %v420 = vshll.u32 %v305, 16
  %v422 = vrot.slane %v420, 1
  %v423 = vsel %vm307, %v418, %v422
  %v424 = vshrl.u32 %v305, 16
  %v426 = vor.u32 %v424, %v422
  %v428 = vshll.u32 %v306, 16
  %v430 = vrot.slane %v428, 1
  %v431 = vsel %vm307, %v426, %v430
  %v432 = vshrl.u32 %v306, 16
  %v434 = vor.u32 %v432, %v430
  %vm452 = vcmask 1047552
  %vm453 = vmand %vm452, %vm307
  %v454 = vsel %vm453, %v434, %v313
  %vm471 = vcmask 1046528
  %v472 = vrot.slane %v291, 1
  %v473 = vrot.slane %v292, 1
  %v474 = vsel %vm471, %v472, %v473
  %v475 = vrot.slane %v293, 1
  %v476 = vsel %vm471, %v473, %v475
  %v477 = vrot.slane %v294, 1
  %v478 = vsel %vm471, %v475, %v477
  %v479 = vrot.slane %v295, 1
  %v480 = vsel %vm471, %v477, %v479
  %v481 = vrot.slane %v296, 1
  %v482 = vsel %vm471, %v479, %v481
  %v483 = vrot.slane %v297, 1
  %v484 = vsel %vm471, %v481, %v483
  %v485 = vrot.slane %v298, 1
  %v486 = vsel %vm471, %v483, %v485
  %v487 = vrot.slane %v299, 1
  %v488 = vsel %vm471, %v485, %v487
  %v489 = vrot.slane %v300, 1
  %v490 = vsel %vm471, %v487, %v489
  %v491 = vrot.slane %v301, 1
  %v492 = vsel %vm471, %v489, %v491
  %v493 = vrot.slane %v302, 1
  %v494 = vsel %vm471, %v491, %v493
  %v495 = vrot.slane %v303, 1
  %v496 = vsel %vm471, %v493, %v495
  %v497 = vrot.slane %v304, 1
  %v498 = vsel %vm471, %v495, %v497
  %v499 = vrot.slane %v305, 1
  %v500 = vsel %vm471, %v497, %v499
  %v501 = vrot.slane %v306, 1
  %v502 = vsel %vm471, %v499, %v501
  %vm518 = vcmask 1046528
  %v521 = vsel %vm518, %v501, %v472
  %vm523 = vsmask.f32 6400
  %v524 = vrot.slane %v309, 1
  %v525 = vrot.slane %v311, 2
  %v526 = vor.u32 %v524, %v525
  %v527 = vrot.slane %v320, 1
  %v528 = vrot.slane %v316, 2
  %v529 = vor.u32 %v527, %v528
  %v530 = vsel %vm523, %v526, %v529
  %v531 = vrot.slane %v328, 1
  %v532 = vrot.slane %v324, 2
  %v533 = vor.u32 %v531, %v532
  %v534 = vsel %vm523, %v529, %v533
  %v535 = vrot.slane %v336, 1
  %v536 = vrot.slane %v332, 2
  %v537 = vor.u32 %v535, %v536
  %v538 = vsel %vm523, %v533, %v537
  %v539 = vrot.slane %v344, 1
  %v540 = vrot.slane %v340, 2
  %v541 = vor.u32 %v539, %v540
  %v542 = vsel %vm523, %v537, %v541
  %v543 = vrot.slane %v352, 1
  %v544 = vrot.slane %v348, 2
  %v545 = vor.u32 %v543, %v544
  %v546 = vsel %vm523, %v541, %v545
  %v547 = vrot.slane %v360, 1
  %v548 = vrot.slane %v356, 2
  %v549 = vor.u32 %v547, %v548
  %v550 = vsel %vm523, %v545, %v549
  %v551 = vrot.slane %v368, 1
  %v552 = vrot.slane %v364, 2
  %v553 = vor.u32 %v551, %v552
  %v554 = vsel %vm523, %v549, %v553
  %v555 = vrot.slane %v376, 1
  %v556 = vrot.slane %v372, 2
  %v557 = vor.u32 %v555, %v556
  %v558 = vsel %vm523, %v553, %v557
  %v559 = vrot.slane %v384, 1
  %v560 = vrot.slane %v380, 2
  %v561 = vor.u32 %v559, %v560
  %v562 = vsel %vm523, %v557, %v561
  %v563 = vrot.slane %v392, 1
  %v564 = vrot.slane %v388, 2
  %v565 = vor.u32 %v563, %v564
  %v566 = vsel %vm523, %v561, %v565
  %v567 = vrot.slane %v400, 1
  %v568 = vrot.slane %v396, 2
  %v569 = vor.u32 %v567, %v568
  %v570 = vsel %vm523, %v565, %v569
  %v571 = vrot.slane %v408, 1
  %v572 = vrot.slane %v404, 2
  %v573 = vor.u32 %v571, %v572
  %v574 = vsel %vm523, %v569, %v573
  %v575 = vrot.slane %v416, 1
  %v576 = vrot.slane %v412, 2
  %v577 = vor.u32 %v575, %v576
  %v578 = vsel %vm523, %v573, %v577
  %v579 = vrot.slane %v424, 1
  %v580 = vrot.slane %v420, 2
  %v581 = vor.u32 %v579, %v580
  %v582 = vsel %vm523, %v577, %v581
  %v583 = vrot.slane %v432, 1
  %v584 = vrot.slane %v428, 2
  %v585 = vor.u32 %v583, %v584
  %v586 = vsel %vm523, %v581, %v585
  %vm604 = vmand %vm471, %vm523
  %v605 = vsel %vm604, %v585, %v526
  %v606 = vld [vmem:[%s1] sm:$0xf]
  %v607 = vld [vmem:[%s1 + $0x4] sm:$0xf]
  %v608 = vld [vmem:[%s1 + $0x8] sm:$0xf]
  %v609 = vld [vmem:[%s1 + $0xc] sm:$0xf]
  %v610 = vld [vmem:[%s1 + $0x10] sm:$0xf]
  %v611 = vld [vmem:[%s1 + $0x14] sm:$0xf]
  %v612 = vld [vmem:[%s1 + $0x18] sm:$0xf]
  %v613 = vld [vmem:[%s1 + $0x1c] sm:$0xf]
  %v614 = vld [vmem:[%s1 + $0x20] sm:$0xf]
  %v615 = vld [vmem:[%s1 + $0x24] sm:$0xf]
  %v616 = vld [vmem:[%s1 + $0x28] sm:$0xf]
  %v617 = vld [vmem:[%s1 + $0x2c] sm:$0xf]
  %v618 = vld [vmem:[%s1 + $0x30] sm:$0xf]
  %v619 = vld [vmem:[%s1 + $0x34] sm:$0xf]
  %v620 = vld [vmem:[%s1 + $0x38] sm:$0xf]
  %v621 = vld [vmem:[%s1 + $0x3c] sm:$0xf]
  %v622 = vld [vmem:[%s1 + $0x40] sm:$0xf]
  %v623 = vld [vmem:[%s1 + $0x44] sm:$0xf]
  %v624 = vld [vmem:[%s1 + $0x48] sm:$0xf]
  %v625 = vld [vmem:[%s1 + $0x4c] sm:$0xf]
  %v626 = vld [vmem:[%s1 + $0x50] sm:$0xf]
  %v627 = vld [vmem:[%s1 + $0x54] sm:$0xf]
  %v628 = vld [vmem:[%s1 + $0x58] sm:$0xf]
  %v629 = vld [vmem:[%s1 + $0x5c] sm:$0xf]
  %v630 = vld [vmem:[%s1 + $0x60] sm:$0xf]
  %v631 = vld [vmem:[%s1 + $0x64] sm:$0xf]
  %v632 = vld [vmem:[%s1 + $0x68] sm:$0xf]
  %v633 = vld [vmem:[%s1 + $0x6c] sm:$0xf]
  %v634 = vld [vmem:[%s1 + $0x70] sm:$0xf]
  %v635 = vld [vmem:[%s1 + $0x74] sm:$0xf]
  %v636 = vld [vmem:[%s1 + $0x78] sm:$0xf]
  %v637 = vld [vmem:[%s1 + $0x7c] sm:$0xf]
  %v638 = vld [vmem:[%s1 + $0x80] sm:$0xf]
  %v639 = vld [vmem:[%s1 + $0x84] sm:$0xf]
  %v640 = vld [vmem:[%s1 + $0x88] sm:$0xf]
  %v641 = vld [vmem:[%s1 + $0x8c] sm:$0xf]
  %v642 = vld [vmem:[%s1 + $0x90] sm:$0xf]
  %v643 = vld [vmem:[%s1 + $0x94] sm:$0xf]
  %v644 = vld [vmem:[%s1 + $0x98] sm:$0xf]
  %v645 = vld [vmem:[%s1 + $0x9c] sm:$0xf]
  %v646 = vld [vmem:[%s1 + $0xa0] sm:$0xf]
  %v647 = vld [vmem:[%s1 + $0xa4] sm:$0xf]
  %v648 = vld [vmem:[%s1 + $0xa8] sm:$0xf]
  %v649 = vld [vmem:[%s1 + $0xac] sm:$0xf]
  %v650 = vld [vmem:[%s1 + $0xb0] sm:$0xf]
  %v651 = vld [vmem:[%s1 + $0xb4] sm:$0xf]
  %v652 = vld [vmem:[%s1 + $0xb8] sm:$0xf]
  %v653 = vld [vmem:[%s1 + $0xbc] sm:$0xf]
  %v654 = vld [vmem:[%s1 + $0xc0] sm:$0xf]
  %v655 = vld [vmem:[%s1 + $0xc4] sm:$0xf]
  %v656 = vld [vmem:[%s1 + $0xc8] sm:$0xf]
  %v657 = vld [vmem:[%s1 + $0xcc] sm:$0xf]
  %v658 = vld [vmem:[%s1 + $0xd0] sm:$0xf]
  %v659 = vld [vmem:[%s1 + $0xd4] sm:$0xf]
  %v660 = vld [vmem:[%s1 + $0xd8] sm:$0xf]
  %v661 = vld [vmem:[%s1 + $0xdc] sm:$0xf]
  %v662 = vld [vmem:[%s1 + $0xe0] sm:$0xf]
  %v663 = vld [vmem:[%s1 + $0xe4] sm:$0xf]
  %v664 = vld [vmem:[%s1 + $0xe8] sm:$0xf]
  %v665 = vld [vmem:[%s1 + $0xec] sm:$0xf]
  %v666 = vld [vmem:[%s1 + $0xf0] sm:$0xf]
  %v667 = vld [vmem:[%s1 + $0xf4] sm:$0xf]
  %v668 = vld [vmem:[%s1 + $0xf8] sm:$0xf]
  %v669 = vld [vmem:[%s1 + $0xfc] sm:$0xf]
  %v734 = vunpack.c.l.b16 %v606
  %v735 = vunpack.c.l.b16 %v607
  %v736 = vunpack.c.l.b16 %v608
  %v737 = vunpack.c.l.b16 %v609
  %v738 = vunpack.c.l.b16 %v610
  %v739 = vunpack.c.l.b16 %v611
  %v740 = vunpack.c.l.b16 %v612
  %v741 = vunpack.c.l.b16 %v613
  %v742 = vunpack.c.l.b16 %v614
  %v743 = vunpack.c.l.b16 %v615
  %v744 = vunpack.c.l.b16 %v616
  %v745 = vunpack.c.l.b16 %v617
  %v746 = vunpack.c.l.b16 %v618
  %v747 = vunpack.c.l.b16 %v619
  %v748 = vunpack.c.l.b16 %v620
  %v749 = vunpack.c.l.b16 %v621
  %v750 = vunpack.c.l.b16 %v622
  %v751 = vunpack.c.l.b16 %v623
  %v752 = vunpack.c.l.b16 %v624
  %v753 = vunpack.c.l.b16 %v625
  %v754 = vunpack.c.l.b16 %v626
  %v755 = vunpack.c.l.b16 %v627
  %v756 = vunpack.c.l.b16 %v628
  %v757 = vunpack.c.l.b16 %v629
  %v758 = vunpack.c.l.b16 %v630
  %v759 = vunpack.c.l.b16 %v631
  %v760 = vunpack.c.l.b16 %v632
  %v761 = vunpack.c.l.b16 %v633
  %v762 = vunpack.c.l.b16 %v634
  %v763 = vunpack.c.l.b16 %v635
  %v764 = vunpack.c.l.b16 %v636
  %v765 = vunpack.c.l.b16 %v637
  %v766 = vunpack.c.l.b16 %v638
  %v767 = vunpack.c.l.b16 %v639
  %v768 = vunpack.c.l.b16 %v640
  %v769 = vunpack.c.l.b16 %v641
  %v770 = vunpack.c.l.b16 %v642
  %v771 = vunpack.c.l.b16 %v643
  %v772 = vunpack.c.l.b16 %v644
  %v773 = vunpack.c.l.b16 %v645
  %v774 = vunpack.c.l.b16 %v646
  %v775 = vunpack.c.l.b16 %v647
  %v776 = vunpack.c.l.b16 %v648
  %v777 = vunpack.c.l.b16 %v649
  %v778 = vunpack.c.l.b16 %v650
  %v779 = vunpack.c.l.b16 %v651
  %v780 = vunpack.c.l.b16 %v652
  %v781 = vunpack.c.l.b16 %v653
  %v782 = vunpack.c.l.b16 %v654
  %v783 = vunpack.c.l.b16 %v655
  %v784 = vunpack.c.l.b16 %v656
  %v785 = vunpack.c.l.b16 %v657
  %v786 = vunpack.c.l.b16 %v658
  %v787 = vunpack.c.l.b16 %v659
  %v788 = vunpack.c.l.b16 %v660
  %v789 = vunpack.c.l.b16 %v661
  %v790 = vunpack.c.l.b16 %v662
  %v791 = vunpack.c.l.b16 %v663
  %v792 = vunpack.c.l.b16 %v664
  %v793 = vunpack.c.l.b16 %v665
  %v794 = vunpack.c.l.b16 %v666
  %v795 = vunpack.c.l.b16 %v667
  %v796 = vunpack.c.l.b16 %v668
  %v797 = vunpack.c.l.b16 %v669
  %v798 = vpack.c.b16 %v735, %v734
  %v799 = vpack.c.b16 %v737, %v736
  %v800 = vpack.c.b16 %v739, %v738
  %v801 = vpack.c.b16 %v741, %v740
  %v802 = vpack.c.b16 %v743, %v742
  %v803 = vpack.c.b16 %v745, %v744
  %v804 = vpack.c.b16 %v747, %v746
  %v805 = vpack.c.b16 %v749, %v748
  %v806 = vpack.c.b16 %v751, %v750
  %v807 = vpack.c.b16 %v753, %v752
  %v808 = vpack.c.b16 %v755, %v754
  %v809 = vpack.c.b16 %v757, %v756
  %v810 = vpack.c.b16 %v759, %v758
  %v811 = vpack.c.b16 %v761, %v760
  %v812 = vpack.c.b16 %v763, %v762
  %v813 = vpack.c.b16 %v765, %v764
  %v814 = vpack.c.b16 %v767, %v766
  %v815 = vpack.c.b16 %v769, %v768
  %v816 = vpack.c.b16 %v771, %v770
  %v817 = vpack.c.b16 %v773, %v772
  %v818 = vpack.c.b16 %v775, %v774
  %v819 = vpack.c.b16 %v777, %v776
  %v820 = vpack.c.b16 %v779, %v778
  %v821 = vpack.c.b16 %v781, %v780
  %v822 = vpack.c.b16 %v783, %v782
  %v823 = vpack.c.b16 %v785, %v784
  %v824 = vpack.c.b16 %v787, %v786
  %v825 = vpack.c.b16 %v789, %v788
  %v826 = vpack.c.b16 %v791, %v790
  %v827 = vpack.c.b16 %v793, %v792
  %v828 = vpack.c.b16 %v795, %v794
  %v829 = vpack.c.b16 %v797, %v796
  %862 = vmatprep.subr.bf16.mxu0 0
  %863 = vmatpush1.bf16.msra.mxu0 %v805
  %864 = vmatprep.subr.bf16.mxu0 0
  %865 = vmatpush1.bf16.msra.mxu0 %v804
  %866 = vmatprep.subr.bf16.mxu0 0
  %867 = vmatpush1.bf16.msra.mxu0 %v803
  %868 = vmatprep.subr.bf16.mxu0 0
  %869 = vmatpush1.bf16.msra.mxu0 %v802
  %870 = vmatprep.subr.bf16.mxu0 0
  %871 = vmatpush1.bf16.msra.mxu0 %v801
  %872 = vmatprep.subr.bf16.mxu0 0
  %873 = vmatpush1.bf16.msra.mxu0 %v800
  %874 = vmatprep.subr.bf16.mxu0 0
  %875 = vmatpush1.bf16.msra.mxu0 %v799
  %876 = vmatprep.subr.bf16.mxu0 0
  %877 = vmatpush1.bf16.msra.mxu0 %v798
  %878 = vmatprep.subr.bf16.mxu0 0
  %879 = vmatpush2.bf16.msra.mxu0 %v813
  %880 = vmatprep.subr.bf16.mxu0 0
  %881 = vmatpush2.bf16.msra.mxu0 %v812
  %882 = vmatprep.subr.bf16.mxu0 0
  %883 = vmatpush2.bf16.msra.mxu0 %v811
  %884 = vmatprep.subr.bf16.mxu0 0
  %885 = vmatpush2.bf16.msra.mxu0 %v810
  %886 = vmatprep.subr.bf16.mxu0 0
  %887 = vmatpush2.bf16.msra.mxu0 %v809
  %888 = vmatprep.subr.bf16.mxu0 0
  %889 = vmatpush2.bf16.msra.mxu0 %v808
  %890 = vmatprep.subr.bf16.mxu0 0
  %891 = vmatpush2.bf16.msra.mxu0 %v807
  %892 = vmatprep.subr.bf16.mxu0 0
  %893 = vmatpush2.bf16.msra.mxu0 %v806
  %894 = vmatprep.mubr.bf16.mxu0 %v319
  %895 = vmatmul.mubr.bf16.gmra.mxu0 %v291
  %v896 = vpop.f32.mrf.mxu0
  %v897 = vadd.f32 0.0, %v896
  %v898 = vpop.f32.mrf.mxu0
  %v899 = vpop.f32.mrf.mxu0
  %v900 = vadd.f32 0.0, %v899
  %v901 = vpop.f32.mrf.mxu0
  %902 = vmatprep.mubr.bf16.mxu0 %v327
  %903 = vmatmul.mubr.bf16.gmra.mxu0 %v292
  %v904 = vpop.f32.mrf.mxu0
  %v905 = vadd.f32 0.0, %v904
  %v906 = vpop.f32.mrf.mxu0
  %v907 = vpop.f32.mrf.mxu0
  %v908 = vadd.f32 0.0, %v907
  %v909 = vpop.f32.mrf.mxu0
  %910 = vmatprep.mubr.bf16.mxu0 %v335
  %911 = vmatmul.mubr.bf16.gmra.mxu0 %v293
  %v912 = vpop.f32.mrf.mxu0
  %v913 = vadd.f32 0.0, %v912
  %v914 = vpop.f32.mrf.mxu0
  %v915 = vpop.f32.mrf.mxu0
  %v916 = vadd.f32 0.0, %v915
  %v917 = vpop.f32.mrf.mxu0
  %918 = vmatprep.mubr.bf16.mxu0 %v343
  %919 = vmatmul.mubr.bf16.gmra.mxu0 %v294
  %v920 = vpop.f32.mrf.mxu0
  %v921 = vadd.f32 0.0, %v920
  %v922 = vpop.f32.mrf.mxu0
  %v923 = vpop.f32.mrf.mxu0
  %v924 = vadd.f32 0.0, %v923
  %v925 = vpop.f32.mrf.mxu0
  %926 = vmatprep.mubr.bf16.mxu0 %v351
  %927 = vmatmul.mubr.bf16.gmra.mxu0 %v295
  %v928 = vpop.f32.mrf.mxu0
  %v929 = vadd.f32 0.0, %v928
  %v930 = vpop.f32.mrf.mxu0
  %v931 = vpop.f32.mrf.mxu0
  %v932 = vadd.f32 0.0, %v931
  %v933 = vpop.f32.mrf.mxu0
  %934 = vmatprep.mubr.bf16.mxu0 %v359
  %935 = vmatmul.mubr.bf16.gmra.mxu0 %v296
  %v936 = vpop.f32.mrf.mxu0
  %v937 = vadd.f32 0.0, %v936
  %v938 = vpop.f32.mrf.mxu0
  %v939 = vpop.f32.mrf.mxu0
  %v940 = vadd.f32 0.0, %v939
  %v941 = vpop.f32.mrf.mxu0
  %942 = vmatprep.mubr.bf16.mxu0 %v367
  %943 = vmatmul.mubr.bf16.gmra.mxu0 %v297
  %v944 = vpop.f32.mrf.mxu0
  %v945 = vadd.f32 0.0, %v944
  %v946 = vpop.f32.mrf.mxu0
  %v947 = vpop.f32.mrf.mxu0
  %v948 = vadd.f32 0.0, %v947
  %v949 = vpop.f32.mrf.mxu0
  %950 = vmatprep.mubr.bf16.mxu0 %v375
  %951 = vmatmul.mubr.bf16.gmra.mxu0 %v298
  %v952 = vpop.f32.mrf.mxu0
  %v953 = vadd.f32 0.0, %v952
  %v954 = vpop.f32.mrf.mxu0
  %v955 = vpop.f32.mrf.mxu0
  %v956 = vadd.f32 0.0, %v955
  %v957 = vpop.f32.mrf.mxu0
  %958 = vmatprep.mubr.bf16.mxu0 %v383
  %959 = vmatmul.mubr.bf16.gmra.mxu0 %v299
  %v960 = vpop.f32.mrf.mxu0
  %v961 = vadd.f32 0.0, %v960
  %v962 = vpop.f32.mrf.mxu0
  %v963 = vpop.f32.mrf.mxu0
  %v964 = vadd.f32 0.0, %v963
  %v965 = vpop.f32.mrf.mxu0
  %966 = vmatprep.mubr.bf16.mxu0 %v391
  %967 = vmatmul.mubr.bf16.gmra.mxu0 %v300
  %v968 = vpop.f32.mrf.mxu0
  %v969 = vadd.f32 0.0, %v968
  %v970 = vpop.f32.mrf.mxu0
  %v971 = vpop.f32.mrf.mxu0
  %v972 = vadd.f32 0.0, %v971
  %v973 = vpop.f32.mrf.mxu0
  %974 = vmatprep.mubr.bf16.mxu0 %v399
  %975 = vmatmul.mubr.bf16.gmra.mxu0 %v301
  %v976 = vpop.f32.mrf.mxu0
  %v977 = vadd.f32 0.0, %v976
  %v978 = vpop.f32.mrf.mxu0
  %v979 = vpop.f32.mrf.mxu0
  %v980 = vadd.f32 0.0, %v979
  %v981 = vpop.f32.mrf.mxu0
  %982 = vmatprep.mubr.bf16.mxu0 %v407
  %983 = vmatmul.mubr.bf16.gmra.mxu0 %v302
  %v984 = vpop.f32.mrf.mxu0
  %v985 = vadd.f32 0.0, %v984
  %v986 = vpop.f32.mrf.mxu0
  %v987 = vpop.f32.mrf.mxu0
  %v988 = vadd.f32 0.0, %v987
  %v989 = vpop.f32.mrf.mxu0
  %990 = vmatprep.mubr.bf16.mxu0 %v415
  %991 = vmatmul.mubr.bf16.gmra.mxu0 %v303
  %v992 = vpop.f32.mrf.mxu0
  %v993 = vadd.f32 0.0, %v992
  %v994 = vpop.f32.mrf.mxu0
  %v995 = vpop.f32.mrf.mxu0
  %v996 = vadd.f32 0.0, %v995
  %v997 = vpop.f32.mrf.mxu0
  %998 = vmatprep.mubr.bf16.mxu0 %v423
  %999 = vmatmul.mubr.bf16.gmra.mxu0 %v304
  %v1000 = vpop.f32.mrf.mxu0
  %v1001 = vadd.f32 0.0, %v1000
  %v1002 = vpop.f32.mrf.mxu0
  %v1003 = vpop.f32.mrf.mxu0
  %v1004 = vadd.f32 0.0, %v1003
  %v1005 = vpop.f32.mrf.mxu0
  %1006 = vmatprep.mubr.bf16.mxu0 %v431
  %1007 = vmatmul.mubr.bf16.gmra.mxu0 %v305
  %v1008 = vpop.f32.mrf.mxu0
  %v1009 = vadd.f32 0.0, %v1008
  %v1010 = vpop.f32.mrf.mxu0
  %v1011 = vpop.f32.mrf.mxu0
  %v1012 = vadd.f32 0.0, %v1011
  %v1013 = vpop.f32.mrf.mxu0
  %1014 = vmatprep.mubr.bf16.mxu0 %v454
  %1015 = vmatmul.mubr.bf16.gmra.mxu0 %v306
  %v1016 = vpop.f32.mrf.mxu0
  %v1017 = vadd.f32 0.0, %v1016
  %v1018 = vpop.f32.mrf.mxu0
  %v1019 = vpop.f32.mrf.mxu0
  %v1020 = vadd.f32 0.0, %v1019
  %v1021 = vpop.f32.mrf.mxu0
  %1022 = vdwg.mxu0
  %1023 = vmatprep.subr.bf16.mxu0 0
  %1024 = vmatpush1.bf16.msra.mxu0 %v821
  %1025 = vmatprep.subr.bf16.mxu0 0
  %1026 = vmatpush1.bf16.msra.mxu0 %v820
  %1027 = vmatprep.subr.bf16.mxu0 0
  %1028 = vmatpush1.bf16.msra.mxu0 %v819
  %1029 = vmatprep.subr.bf16.mxu0 0
  %1030 = vmatpush1.bf16.msra.mxu0 %v818
  %1031 = vmatprep.subr.bf16.mxu0 0
  %1032 = vmatpush1.bf16.msra.mxu0 %v817
  %1033 = vmatprep.subr.bf16.mxu0 0
  %1034 = vmatpush1.bf16.msra.mxu0 %v816
  %1035 = vmatprep.subr.bf16.mxu0 0
  %1036 = vmatpush1.bf16.msra.mxu0 %v815
  %1037 = vmatprep.subr.bf16.mxu0 0
  %1038 = vmatpush1.bf16.msra.mxu0 %v814
  %1039 = vmatprep.subr.bf16.mxu0 0
  %1040 = vmatpush2.bf16.msra.mxu0 %v829
  %1041 = vmatprep.subr.bf16.mxu0 0
  %1042 = vmatpush2.bf16.msra.mxu0 %v828
  %1043 = vmatprep.subr.bf16.mxu0 0
  %1044 = vmatpush2.bf16.msra.mxu0 %v827
  %1045 = vmatprep.subr.bf16.mxu0 0
  %1046 = vmatpush2.bf16.msra.mxu0 %v826
  %1047 = vmatprep.subr.bf16.mxu0 0
  %1048 = vmatpush2.bf16.msra.mxu0 %v825
  %1049 = vmatprep.subr.bf16.mxu0 0
  %1050 = vmatpush2.bf16.msra.mxu0 %v824
  %1051 = vmatprep.subr.bf16.mxu0 0
  %1052 = vmatpush2.bf16.msra.mxu0 %v823
  %1053 = vmatprep.subr.bf16.mxu0 0
  %1054 = vmatpush2.bf16.msra.mxu0 %v822
  %1055 = vmatprep.mubr.bf16.mxu0 %v530
  %1056 = vmatmul.mubr.bf16.gmra.mxu0 %v474
  %v1057 = vpop.f32.mrf.mxu0
  %v1058 = vadd.f32 %v897, %v1057
  %v1059 = vpop.f32.mrf.mxu0
  %v1060 = vpop.f32.mrf.mxu0
  %v1061 = vadd.f32 %v900, %v1060
  %v1062 = vpop.f32.mrf.mxu0
  %1063 = vmatprep.mubr.bf16.mxu0 %v534
  %1064 = vmatmul.mubr.bf16.gmra.mxu0 %v476
  %v1065 = vpop.f32.mrf.mxu0
  %v1066 = vadd.f32 %v905, %v1065
  %v1067 = vpop.f32.mrf.mxu0
  %v1068 = vpop.f32.mrf.mxu0
  %v1069 = vadd.f32 %v908, %v1068
  %v1070 = vpop.f32.mrf.mxu0
  %1071 = vmatprep.mubr.bf16.mxu0 %v538
  %1072 = vmatmul.mubr.bf16.gmra.mxu0 %v478
  %v1073 = vpop.f32.mrf.mxu0
  %v1074 = vadd.f32 %v913, %v1073
  %v1075 = vpop.f32.mrf.mxu0
  %v1076 = vpop.f32.mrf.mxu0
  %v1077 = vadd.f32 %v916, %v1076
  %v1078 = vpop.f32.mrf.mxu0
  %1079 = vmatprep.mubr.bf16.mxu0 %v542
  %1080 = vmatmul.mubr.bf16.gmra.mxu0 %v480
  %v1081 = vpop.f32.mrf.mxu0
  %v1082 = vadd.f32 %v921, %v1081
  %v1083 = vpop.f32.mrf.mxu0
  %v1084 = vpop.f32.mrf.mxu0
  %v1085 = vadd.f32 %v924, %v1084
  %v1086 = vpop.f32.mrf.mxu0
  %1087 = vmatprep.mubr.bf16.mxu0 %v546
  %1088 = vmatmul.mubr.bf16.gmra.mxu0 %v482
  %v1089 = vpop.f32.mrf.mxu0
  %v1090 = vadd.f32 %v929, %v1089
  %v1091 = vpop.f32.mrf.mxu0
  %v1092 = vpop.f32.mrf.mxu0
  %v1093 = vadd.f32 %v932, %v1092
  %v1094 = vpop.f32.mrf.mxu0
  %1095 = vmatprep.mubr.bf16.mxu0 %v550
  %1096 = vmatmul.mubr.bf16.gmra.mxu0 %v484
  %v1097 = vpop.f32.mrf.mxu0
  %v1098 = vadd.f32 %v937, %v1097
  %v1099 = vpop.f32.mrf.mxu0
  %v1100 = vpop.f32.mrf.mxu0
  %v1101 = vadd.f32 %v940, %v1100
  %v1102 = vpop.f32.mrf.mxu0
  %1103 = vmatprep.mubr.bf16.mxu0 %v554
  %1104 = vmatmul.mubr.bf16.gmra.mxu0 %v486
  %v1105 = vpop.f32.mrf.mxu0
  %v1106 = vadd.f32 %v945, %v1105
  %v1107 = vpop.f32.mrf.mxu0
  %v1108 = vpop.f32.mrf.mxu0
  %v1109 = vadd.f32 %v948, %v1108
  %v1110 = vpop.f32.mrf.mxu0
  %1111 = vmatprep.mubr.bf16.mxu0 %v558
  %1112 = vmatmul.mubr.bf16.gmra.mxu0 %v488
  %v1113 = vpop.f32.mrf.mxu0
  %v1114 = vadd.f32 %v953, %v1113
  %v1115 = vpop.f32.mrf.mxu0
  %v1116 = vpop.f32.mrf.mxu0
  %v1117 = vadd.f32 %v956, %v1116
  %v1118 = vpop.f32.mrf.mxu0
  %1119 = vmatprep.mubr.bf16.mxu0 %v562
  %1120 = vmatmul.mubr.bf16.gmra.mxu0 %v490
  %v1121 = vpop.f32.mrf.mxu0
  %v1122 = vadd.f32 %v961, %v1121
  %v1123 = vpop.f32.mrf.mxu0
  %v1124 = vpop.f32.mrf.mxu0
  %v1125 = vadd.f32 %v964, %v1124
  %v1126 = vpop.f32.mrf.mxu0
  %1127 = vmatprep.mubr.bf16.mxu0 %v566
  %1128 = vmatmul.mubr.bf16.gmra.mxu0 %v492
  %v1129 = vpop.f32.mrf.mxu0
  %v1130 = vadd.f32 %v969, %v1129
  %v1131 = vpop.f32.mrf.mxu0
  %v1132 = vpop.f32.mrf.mxu0
  %v1133 = vadd.f32 %v972, %v1132
  %v1134 = vpop.f32.mrf.mxu0
  %1135 = vmatprep.mubr.bf16.mxu0 %v570
  %1136 = vmatmul.mubr.bf16.gmra.mxu0 %v494
  %v1137 = vpop.f32.mrf.mxu0
  %v1138 = vadd.f32 %v977, %v1137
  %v1139 = vpop.f32.mrf.mxu0
  %v1140 = vpop.f32.mrf.mxu0
  %v1141 = vadd.f32 %v980, %v1140
  %v1142 = vpop.f32.mrf.mxu0
  %1143 = vmatprep.mubr.bf16.mxu0 %v574
  %1144 = vmatmul.mubr.bf16.gmra.mxu0 %v496
  %v1145 = vpop.f32.mrf.mxu0
  %v1146 = vadd.f32 %v985, %v1145
  %v1147 = vpop.f32.mrf.mxu0
  %v1148 = vpop.f32.mrf.mxu0
  %v1149 = vadd.f32 %v988, %v1148
  %v1150 = vpop.f32.mrf.mxu0
  %1151 = vmatprep.mubr.bf16.mxu0 %v578
  %1152 = vmatmul.mubr.bf16.gmra.mxu0 %v498
  %v1153 = vpop.f32.mrf.mxu0
  %v1154 = vadd.f32 %v993, %v1153
  %v1155 = vpop.f32.mrf.mxu0
  %v1156 = vpop.f32.mrf.mxu0
  %v1157 = vadd.f32 %v996, %v1156
  %v1158 = vpop.f32.mrf.mxu0
  %1159 = vmatprep.mubr.bf16.mxu0 %v582
  %1160 = vmatmul.mubr.bf16.gmra.mxu0 %v500
  %v1161 = vpop.f32.mrf.mxu0
  %v1162 = vadd.f32 %v1001, %v1161
  %v1163 = vpop.f32.mrf.mxu0
  %v1164 = vpop.f32.mrf.mxu0
  %v1165 = vadd.f32 %v1004, %v1164
  %v1166 = vpop.f32.mrf.mxu0
  %1167 = vmatprep.mubr.bf16.mxu0 %v586
  %1168 = vmatmul.mubr.bf16.gmra.mxu0 %v502
  %v1169 = vpop.f32.mrf.mxu0
  %v1170 = vadd.f32 %v1009, %v1169
  %v1171 = vpop.f32.mrf.mxu0
  %v1172 = vpop.f32.mrf.mxu0
  %v1173 = vadd.f32 %v1012, %v1172
  %v1174 = vpop.f32.mrf.mxu0
  %1175 = vmatprep.mubr.bf16.mxu0 %v605
  %1176 = vmatmul.mubr.bf16.gmra.mxu0 %v521
  %v1177 = vpop.f32.mrf.mxu0
  %v1178 = vadd.f32 %v1017, %v1177
  %v1179 = vpop.f32.mrf.mxu0
  %v1180 = vpop.f32.mrf.mxu0
  %v1181 = vadd.f32 %v1020, %v1180
  %v1182 = vpop.f32.mrf.mxu0
  %1183 = vdwg.mxu0
  %v1184 = vld [vmem:[%s2] sm:$0xff]
  %v1185 = vld [vmem:[%s2 + $0x8] sm:$0xff]
  %v1186 = vadd.f32 %v1058, %v1184
  %v1187 = vadd.f32 %v1061, %v1185
  %v1188 = vadd.f32 %v1066, %v1184
  %v1189 = vadd.f32 %v1069, %v1185
  %v1190 = vadd.f32 %v1074, %v1184
  %v1191 = vadd.f32 %v1077, %v1185
  %v1192 = vadd.f32 %v1082, %v1184
  %v1193 = vadd.f32 %v1085, %v1185
  %v1194 = vadd.f32 %v1090, %v1184
  %v1195 = vadd.f32 %v1093, %v1185
  %v1196 = vadd.f32 %v1098, %v1184
  %v1197 = vadd.f32 %v1101, %v1185
  %v1198 = vadd.f32 %v1106, %v1184
  %v1199 = vadd.f32 %v1109, %v1185
  %v1200 = vadd.f32 %v1114, %v1184
  %v1201 = vadd.f32 %v1117, %v1185
  %v1202 = vadd.f32 %v1122, %v1184
  %v1203 = vadd.f32 %v1125, %v1185
  %v1204 = vadd.f32 %v1130, %v1184
  %v1205 = vadd.f32 %v1133, %v1185
  %v1206 = vadd.f32 %v1138, %v1184
  %v1207 = vadd.f32 %v1141, %v1185
  %v1208 = vadd.f32 %v1146, %v1184
  %v1209 = vadd.f32 %v1149, %v1185
  %v1210 = vadd.f32 %v1154, %v1184
  %v1211 = vadd.f32 %v1157, %v1185
  %v1212 = vadd.f32 %v1162, %v1184
  %v1213 = vadd.f32 %v1165, %v1185
  %v1214 = vadd.f32 %v1170, %v1184
  %v1215 = vadd.f32 %v1173, %v1185
  %v1216 = vadd.f32 %v1178, %v1184
  %v1217 = vadd.f32 %v1181, %v1185
  %v1218 = vmax.f32 %v1186, 0.0
  %v1219 = vmax.f32 %v1187, 0.0
  %v1220 = vmax.f32 %v1188, 0.0
  %v1221 = vmax.f32 %v1189, 0.0
  %v1222 = vmax.f32 %v1190, 0.0
  %v1223 = vmax.f32 %v1191, 0.0
  %v1224 = vmax.f32 %v1192, 0.0
  %v1225 = vmax.f32 %v1193, 0.0
  %v1226 = vmax.f32 %v1194, 0.0
  %v1227 = vmax.f32 %v1195, 0.0
  %v1228 = vmax.f32 %v1196, 0.0
  %v1229 = vmax.f32 %v1197, 0.0
  %v1230 = vmax.f32 %v1198, 0.0
  %v1231 = vmax.f32 %v1199, 0.0
  %v1232 = vmax.f32 %v1200, 0.0
  %v1233 = vmax.f32 %v1201, 0.0
  %v1234 = vmax.f32 %v1202, 0.0
  %v1235 = vmax.f32 %v1203, 0.0
  %v1236 = vmax.f32 %v1204, 0.0
  %v1237 = vmax.f32 %v1205, 0.0
  %v1238 = vmax.f32 %v1206, 0.0
  %v1239 = vmax.f32 %v1207, 0.0
  %v1240 = vmax.f32 %v1208, 0.0
  %v1241 = vmax.f32 %v1209, 0.0
  %v1242 = vmax.f32 %v1210, 0.0
  %v1243 = vmax.f32 %v1211, 0.0
  %v1244 = vmax.f32 %v1212, 0.0
  %v1245 = vmax.f32 %v1213, 0.0
  %v1246 = vmax.f32 %v1214, 0.0
  %v1247 = vmax.f32 %v1215, 0.0
  %v1248 = vmax.f32 %v1216, 0.0
  %v1249 = vmax.f32 %v1217, 0.0
  %v1250 = vmax.f32 %v1218, %v1219
  %v1251 = vrot.slane %v1250, 4
  %v1252 = vmax.f32 %v1250, %v1251
  %v1253 = vrot.slane %v1252, 2
  %v1254 = vmax.f32 %v1252, %v1253
  %v1255 = vrot.slane %v1254, 1
  %v1256 = vmax.f32 %v1254, %v1255
  %v1257 = vmax.f32 %v1220, %v1221
  %v1258 = vrot.slane %v1257, 4
  %v1259 = vmax.f32 %v1257, %v1258
  %v1260 = vrot.slane %v1259, 2
  %v1261 = vmax.f32 %v1259, %v1260
  %v1262 = vrot.slane %v1261, 1
  %v1263 = vmax.f32 %v1261, %v1262
  %v1264 = vmax.f32 %v1222, %v1223
  %v1265 = vrot.slane %v1264, 4
  %v1266 = vmax.f32 %v1264, %v1265
  %v1267 = vrot.slane %v1266, 2
  %v1268 = vmax.f32 %v1266, %v1267
  %v1269 = vrot.slane %v1268, 1
  %v1270 = vmax.f32 %v1268, %v1269
  %v1271 = vmax.f32 %v1224, %v1225
  %v1272 = vrot.slane %v1271, 4
  %v1273 = vmax.f32 %v1271, %v1272
  %v1274 = vrot.slane %v1273, 2
  %v1275 = vmax.f32 %v1273, %v1274
  %v1276 = vrot.slane %v1275, 1
  %v1277 = vmax.f32 %v1275, %v1276
  %v1278 = vmax.f32 %v1226, %v1227
  %v1279 = vrot.slane %v1278, 4
  %v1280 = vmax.f32 %v1278, %v1279
  %v1281 = vrot.slane %v1280, 2
  %v1282 = vmax.f32 %v1280, %v1281
  %v1283 = vrot.slane %v1282, 1
  %v1284 = vmax.f32 %v1282, %v1283
  %v1285 = vmax.f32 %v1228, %v1229
  %v1286 = vrot.slane %v1285, 4
  %v1287 = vmax.f32 %v1285, %v1286
  %v1288 = vrot.slane %v1287, 2
  %v1289 = vmax.f32 %v1287, %v1288
  %v1290 = vrot.slane %v1289, 1
  %v1291 = vmax.f32 %v1289, %v1290
  %v1292 = vmax.f32 %v1230, %v1231
  %v1293 = vrot.slane %v1292, 4
  %v1294 = vmax.f32 %v1292, %v1293
  %v1295 = vrot.slane %v1294, 2
  %v1296 = vmax.f32 %v1294, %v1295
  %v1297 = vrot.slane %v1296, 1
  %v1298 = vmax.f32 %v1296, %v1297
  %v1299 = vmax.f32 %v1232, %v1233
  %v1300 = vrot.slane %v1299, 4
  %v1301 = vmax.f32 %v1299, %v1300
  %v1302 = vrot.slane %v1301, 2
  %v1303 = vmax.f32 %v1301, %v1302
  %v1304 = vrot.slane %v1303, 1
  %v1305 = vmax.f32 %v1303, %v1304
  %v1306 = vmax.f32 %v1234, %v1235
  %v1307 = vrot.slane %v1306, 4
  %v1308 = vmax.f32 %v1306, %v1307
  %v1309 = vrot.slane %v1308, 2
  %v1310 = vmax.f32 %v1308, %v1309
  %v1311 = vrot.slane %v1310, 1
  %v1312 = vmax.f32 %v1310, %v1311
  %v1313 = vmax.f32 %v1236, %v1237
  %v1314 = vrot.slane %v1313, 4
  %v1315 = vmax.f32 %v1313, %v1314
  %v1316 = vrot.slane %v1315, 2
  %v1317 = vmax.f32 %v1315, %v1316
  %v1318 = vrot.slane %v1317, 1
  %v1319 = vmax.f32 %v1317, %v1318
  %v1320 = vmax.f32 %v1238, %v1239
  %v1321 = vrot.slane %v1320, 4
  %v1322 = vmax.f32 %v1320, %v1321
  %v1323 = vrot.slane %v1322, 2
  %v1324 = vmax.f32 %v1322, %v1323
  %v1325 = vrot.slane %v1324, 1
  %v1326 = vmax.f32 %v1324, %v1325
  %v1327 = vmax.f32 %v1240, %v1241
  %v1328 = vrot.slane %v1327, 4
  %v1329 = vmax.f32 %v1327, %v1328
  %v1330 = vrot.slane %v1329, 2
  %v1331 = vmax.f32 %v1329, %v1330
  %v1332 = vrot.slane %v1331, 1
  %v1333 = vmax.f32 %v1331, %v1332
  %v1334 = vmax.f32 %v1242, %v1243
  %v1335 = vrot.slane %v1334, 4
  %v1336 = vmax.f32 %v1334, %v1335
  %v1337 = vrot.slane %v1336, 2
  %v1338 = vmax.f32 %v1336, %v1337
  %v1339 = vrot.slane %v1338, 1
  %v1340 = vmax.f32 %v1338, %v1339
  %v1341 = vmax.f32 %v1244, %v1245
  %v1342 = vrot.slane %v1341, 4
  %v1343 = vmax.f32 %v1341, %v1342
  %v1344 = vrot.slane %v1343, 2
  %v1345 = vmax.f32 %v1343, %v1344
  %v1346 = vrot.slane %v1345, 1
  %v1347 = vmax.f32 %v1345, %v1346
  %v1348 = vmax.f32 %v1246, %v1247
  %v1349 = vrot.slane %v1348, 4
  %v1350 = vmax.f32 %v1348, %v1349
  %v1351 = vrot.slane %v1350, 2
  %v1352 = vmax.f32 %v1350, %v1351
  %v1353 = vrot.slane %v1352, 1
  %v1354 = vmax.f32 %v1352, %v1353
  %v1355 = vmax.f32 %v1248, %v1249
  %v1356 = vrot.slane %v1355, 4
  %v1357 = vmax.f32 %v1355, %v1356
  %v1358 = vrot.slane %v1357, 2
  %v1359 = vmax.f32 %v1357, %v1358
  %v1360 = vrot.slane %v1359, 1
  %v1361 = vmax.f32 %v1359, %v1360
  %vm1378 = vcmask 1041409
  %v1379 = vsel %vm1378, %v1263, %v1256
  %vm1380 = vcmask 1042434
  %v1381 = vsel %vm1380, %v1270, %v1379
  %vm1382 = vcmask 1043459
  %v1383 = vsel %vm1382, %v1277, %v1381
  %vm1384 = vcmask 1044484
  %v1385 = vsel %vm1384, %v1284, %v1383
  %vm1386 = vcmask 1045509
  %v1387 = vsel %vm1386, %v1291, %v1385
  %vm1388 = vcmask 1046534
  %v1389 = vsel %vm1388, %v1298, %v1387
  %vm1390 = vcmask 1047559
  %v1391 = vsel %vm1390, %v1305, %v1389
  %v1392 = vsel %vm1378, %v1319, %v1312
  %v1393 = vsel %vm1380, %v1326, %v1392
  %v1394 = vsel %vm1382, %v1333, %v1393
  %v1395 = vsel %vm1384, %v1340, %v1394
  %v1396 = vsel %vm1386, %v1347, %v1395
  %v1397 = vsel %vm1388, %v1354, %v1396
  %v1398 = vsel %vm1390, %v1361, %v1397
  %1401 = vst [vmem:[%s3] sm:$0xff] %v1391
  %1402 = vst [vmem:[%s3 + $0x8] sm:$0xff] %v1398
  // Predicated region
  $region14: #{char_cnn_embedding.1} parent=0 // pred_check
    _
  $region15: #{char_cnn_embedding.1} parent=0 // pred_check_branch
    %1404 = sbr.rel (0) target = $region17
  $region16: #{char_cnn_embedding.1} parent=0 // pred_region
    _
  $region17: #{char_cnn_embedding.1} parent=0 // pred_fallthru
    _
  // Predicated region
  $region18: #{char_cnn_embedding.1} parent=0 // pred_check
    _
  $region19: #{char_cnn_embedding.1} parent=0 // pred_check_branch
    %1406 = sbr.rel (0) target = $region21
  $region20: #{char_cnn_embedding.1} parent=0 // pred_region
    _
  $region21: #{char_cnn_embedding.1} parent=0 // pred_fallthru
    _

</llo_original>
